<compile_context>
chip_gen: v6e
topology: v6e:2x2x1
jax: 0.10.0
libtpu: 0.0.40
codegen_flags: <defaults>
</compile_context>

<pallas_src>
import jax
import jax.numpy as jnp
from jax.experimental import pallas as pl
from jax.experimental.pallas import tpu as pltpu


def _round_up(x, m):
    return ((x + m - 1) // m) * m


def _vmem_limit_bytes():
    """Per-generation VMEM budget: never request the whole physical VMEM."""
    try:
        cap = pltpu.get_tpu_info().vmem_capacity_bytes
    except Exception:
        cap = 128 << 20  # assume a 128-MiB part if the query is unavailable
    # 64 MiB on v5e/v6e (128-MiB parts); ~48 MiB on v7x (64-MiB part).
    return min(64 << 20, int(cap * 3 // 4))


def _patcher_kernel(x_ref, w_ref, b_ref, o_ref):
    # m1: patch-embedding conv == matmul (bf16 MXU operands, f32 accumulate)
    y = jnp.dot(x_ref[...], w_ref[...], preferred_element_type=jnp.float32)
    y = y + b_ref[...]                       # bias broadcast over rows (f32)
    # m2: GELU, tanh approximation (== nn.GELU(approximate='tanh')).
    # Kept in f32: safe on v5e (no bf16 VPU/EUP); on v6e/v7x the kernel is
    # HBM/MXU bound at ViT shapes so this epilogue is mostly free filler.
    c = 0.7978845608028654                   # sqrt(2/pi)
    y = 0.5 * y * (1.0 + jnp.tanh(c * (y + 0.044715 * (y * y * y))))
    o_ref[...] = y.astype(o_ref.dtype)


def prepare_patcher_params(weight, bias, patch_size, *,
                           matmul_dtype=jnp.bfloat16):
    """One-time weight/bias preparation (transpose + pad + cast).

    Call once at model init so `patcher_forward` never touches the raw Conv2d
    weight on the per-call hot path.  `matmul_dtype=jnp.float32` gives strict
    Conv2d parity at the cost of MXU throughput.
    """
    D, C, P, P2 = weight.shape
    if P != patch_size or P2 != patch_size:
        raise ValueError("weight kernel size must equal patch_size")
    K = C * P * P
    Kp = _round_up(K, 128)
    Dp = _round_up(D, 128)
    w_mat = weight.reshape(D, K).T.astype(matmul_dtype)            # (K, D)
    w_p = jnp.zeros((Kp, Dp), matmul_dtype).at[:K, :D].set(w_mat)
    b_p = jnp.zeros((1, Dp), jnp.float32).at[:, :D].set(
        bias.astype(jnp.float32).reshape(1, D))
    meta = dict(C=C, D=D, P=P, K=K, Kp=Kp, Dp=Dp, matmul_dtype=matmul_dtype)
    return w_p, b_p, meta


def _choose_m_tiling(M, tm, Kp, Dp, in_bytes, out_bytes, vmem_limit):
    """Pick an M tile that fits VMEM, splits M evenly, and gives >=2 tiles."""
    M8 = _round_up(max(M, 8), 8)
    t = _round_up(min(tm, M8), 8)

    def footprint(tt):
        return (2 * tt * Kp * in_bytes       # patch tile, double-buffered
                + 2 * tt * Dp * out_bytes    # output tile, double-buffered
                + Kp * Dp * in_bytes         # resident weight
                + Dp * 4                     # resident bias
                + (2 << 20))                 # slack for compiler scratch

    while footprint(t) > vmem_limit and t > 64:
        t = _round_up(t // 2, 8)

    n_tiles = -(-M8 // t)
    if M8 >= 16:
        # at least 2 tiles so both v7x TensorCores get work under "parallel"
        n_tiles = max(n_tiles, 2)
    t = _round_up(-(-M8 // n_tiles), 8)      # near-equal split, minimal pad
    Mp = n_tiles * t
    return t, n_tiles, Mp


def patcher_forward(x, w_p, b_p, meta, *, tm=1024,
                    out_dtype=jnp.bfloat16, channels_first=False):
    """Patcher(m1=Conv2d(C, D, P, stride=P), m2=GELU(tanh)) forward.

    x: (N, C, H, W).  Returns a (N*Hp*Wp, D) token-major slab by default
    (what a ViT consumer wants); set channels_first=True for the PyTorch
    Conv2d (N, D, Hp, Wp) layout (costs one extra transpose pass).
    """
    C, D, P = meta["C"], meta["D"], meta["P"]
    K, Kp, Dp = meta["K"], meta["Kp"], meta["Dp"]
    mdt = meta["matmul_dtype"]

    N, Cx, H, W = x.shape
    if Cx != C:
        raise ValueError("channel mismatch between input and weight")
    if H % P or W % P:
        raise ValueError("spatial dims must be divisible by the patch size")
    Hp, Wp = H // P, W // P
    M = N * Hp * Wp

    # --- im2col: non-overlapping PxP patches, channel-major flatten ---------
    # Single fused XLA transpose+cast pass (read x f32 once, write bf16 once).
    # TODO(synk): fold this pass into the kernel to drop its HBM round trip.
    patches = x.reshape(N, C, Hp, P, Wp, P)
    patches = jnp.transpose(patches, (0, 2, 4, 1, 3, 5)).reshape(M, K)
    patches = patches.astype(mdt)

    vmem_limit = _vmem_limit_bytes()
    in_b = jnp.dtype(mdt).itemsize
    out_b = jnp.dtype(out_dtype).itemsize
    TM, n_tiles, Mp = _choose_m_tiling(M, tm, Kp, Dp, in_b, out_b, vmem_limit)

    # Pad rows/cols to the tiled shape.  Padded rows evaluate GELU(bias) != 0
    # inside the kernel but are sliced off below; K/D padding is zero so it
    # never affects the valid results.
    if Mp != M or Kp != K:
        patches_p = jnp.zeros((Mp, Kp), mdt).at[:M, :K].set(patches)
    else:
        patches_p = patches

    cost = pl.CostEstimate(
        flops=2 * Mp * Kp * Dp,
        transcendentals=Mp * Dp,
        bytes_accessed=(in_b * (Mp * Kp + Kp * Dp) + out_b * Mp * Dp + 4 * Dp),
    )

    # NOTE: weight/bias have constant index_maps and are fetched once; they
    # could be marked pipeline_mode=pl.Buffered(1) to save one Kp x Dp buffer
    # (only matters for very large embed dims), left default-buffered here.
    out = pl.pallas_call(
        _patcher_kernel,
        out_shape=jax.ShapeDtypeStruct((Mp, Dp), out_dtype),
        grid_spec=pltpu.PrefetchScalarGridSpec(
            num_scalar_prefetch=0,
            grid=(n_tiles,),
            in_specs=[
                pl.BlockSpec((TM, Kp), lambda i: (i, 0)),   # patch rows: tiled
                pl.BlockSpec((Kp, Dp), lambda i: (0, 0)),   # weight: resident
                pl.BlockSpec((1, Dp), lambda i: (0, 0)),    # bias: resident
            ],
            out_specs=pl.BlockSpec((TM, Dp), lambda i: (i, 0)),
        ),
        compiler_params=pltpu.CompilerParams(
            dimension_semantics=("parallel",),   # shard M tiles across cores
            vmem_limit_bytes=vmem_limit,
        ),
        cost_estimate=cost,
    )(patches_p, w_p, b_p)

    if Mp != M or Dp != D:
        out = out[:M, :D]
    if channels_first:
        # PyTorch Conv2d output layout (N, D, Hp, Wp) -- extra HBM pass.
        out = jnp.transpose(out.reshape(N, Hp, Wp, D), (0, 3, 1, 2))
    return out


if __name__ == "__main__":
    # small shapes: batch=2, channels=4, spatial=16, patch=4, embed dim=32
    N, C, H, W = 2, 4, 16, 16
    P, D = 4, 32

    key = jax.random.PRNGKey(0)
    kx, kw, kb = jax.random.split(key, 3)
    x = jax.random.normal(kx, (N, C, H, W), dtype=jnp.float32)
    weight = jax.random.normal(kw, (D, C, P, P), dtype=jnp.float32) * 0.05
    bias = jax.random.normal(kb, (D,), dtype=jnp.float32) * 0.05

    # one-time param prep (model init), then the fast forward
    w_p, b_p, meta = prepare_patcher_params(weight, bias, P)
    out_tok = patcher_forward(x, w_p, b_p, meta)                       # (tokens, D)
    out_nchw = patcher_forward(x, w_p, b_p, meta, channels_first=True)  # (N,D,Hp,Wp)
    out_tok, out_nchw = jax.block_until_ready((out_tok, out_nchw))

    # reference in plain JAX (f32 math): Conv2d(P, stride=P) -> GELU(tanh)
    Hp, Wp = H // P, W // P
    patches = x.reshape(N, C, Hp, P, Wp, P)
    patches = jnp.transpose(patches, (0, 2, 4, 1, 3, 5)).reshape(-1, C * P * P)
    ref = patches @ weight.reshape(D, -1).T + bias
    c = jnp.sqrt(2.0 / jnp.pi)
    ref = 0.5 * ref * (1.0 + jnp.tanh(c * (ref + 0.044715 * ref ** 3)))
    ref_nchw = jnp.transpose(ref.reshape(N, Hp, Wp, D), (0, 3, 1, 2))

    assert out_tok.shape == (N * Hp * Wp, D)
    assert out_nchw.shape == (N, D, Hp, Wp)
    # bf16 MXU operands + bf16 output -> loosened tolerance vs f32 reference
    err_tok = float(jnp.max(jnp.abs(out_tok.astype(jnp.float32) - ref)))
    err_nchw = float(jnp.max(jnp.abs(out_nchw.astype(jnp.float32) - ref_nchw)))
    assert jnp.allclose(out_tok.astype(jnp.float32), ref,
                        atol=2e-2, rtol=2e-2), err_tok
    assert jnp.allclose(out_nchw.astype(jnp.float32), ref_nchw,
                        atol=2e-2, rtol=2e-2), err_nchw
    print("KERNEL_OK")
</pallas_src>

<mosaic_0001>
module attributes {stable_mosaic.version = 11 : i64} {
  func.func @_patcher_kernel(%arg0: i32, %arg1: memref<16x128xbf16, #tpu.memory_space<vmem>>, %arg2: memref<128x128xbf16, #tpu.memory_space<vmem>>, %arg3: memref<1x128xf32, #tpu.memory_space<vmem>>, %arg4: memref<16x128xbf16, #tpu.memory_space<vmem>>) attributes {dimension_semantics = [#tpu.dimension_semantics<parallel>], iteration_bounds = array<i64: 2>, scalar_prefetch = 0 : i64, scratch_operands = 0 : i64, tpu.core_type = #tpu.core_type<tc>, window_params = [{transform_indices = @transform_0, window_bounds = array<i64: 16, 128>}, {pipeline_mode = #tpu.pipeline_mode<synchronous>, transform_indices = @transform_1, window_bounds = array<i64: 128, 128>}, {pipeline_mode = #tpu.pipeline_mode<synchronous>, transform_indices = @transform_2, window_bounds = array<i64: 1, 128>}, {transform_indices = @transform_3, window_bounds = array<i64: 16, 128>}]} {
    %c0 = arith.constant 0 : index
    %c0_0 = arith.constant 0 : index
    %0 = vector.load %arg1[%c0, %c0_0] : memref<16x128xbf16, #tpu.memory_space<vmem>>, vector<16x128xbf16>
    %c0_1 = arith.constant 0 : index
    %c0_2 = arith.constant 0 : index
    %1 = vector.load %arg2[%c0_1, %c0_2] : memref<128x128xbf16, #tpu.memory_space<vmem>>, vector<128x128xbf16>
    %cst = arith.constant dense<0.000000e+00> : vector<16x128xf32>
    %2 = tpu.matmul %0, %1, %cst {dimension_numbers = #tpu.dot_dimension_numbers<[1], [0], [0], [1], [0, 0, 1, 1], [], []>} : vector<16x128xbf16>, vector<128x128xbf16>, vector<16x128xf32> -> vector<16x128xf32>
    %c0_3 = arith.constant 0 : index
    %c0_4 = arith.constant 0 : index
    %3 = vector.load %arg3[%c0_3, %c0_4] : memref<1x128xf32, #tpu.memory_space<vmem>>, vector<1x128xf32>
    %4 = vector.broadcast %3 : vector<1x128xf32> to vector<16x128xf32>
    %5 = arith.addf %2, %4 : vector<16x128xf32>
    %cst_5 = arith.constant 5.000000e-01 : f32
    %6 = vector.broadcast %cst_5 : f32 to vector<16x128xf32>
    %7 = arith.mulf %6, %5 : vector<16x128xf32>
    %8 = arith.mulf %5, %5 : vector<16x128xf32>
    %9 = arith.mulf %8, %5 : vector<16x128xf32>
    %cst_6 = arith.constant 4.471500e-02 : f32
    %10 = vector.broadcast %cst_6 : f32 to vector<16x128xf32>
    %11 = arith.mulf %10, %9 : vector<16x128xf32>
    %12 = arith.addf %5, %11 : vector<16x128xf32>
    %cst_7 = arith.constant 0.797884583 : f32
    %13 = vector.broadcast %cst_7 : f32 to vector<16x128xf32>
    %14 = arith.mulf %13, %12 : vector<16x128xf32>
    %15 = math.tanh %14 : vector<16x128xf32>
    %cst_8 = arith.constant 1.000000e+00 : f32
    %16 = vector.broadcast %cst_8 : f32 to vector<16x128xf32>
    %17 = arith.addf %16, %15 : vector<16x128xf32>
    %18 = arith.mulf %7, %17 : vector<16x128xf32>
    %19 = arith.truncf %18 : vector<16x128xf32> to vector<16x128xbf16>
    %c0_9 = arith.constant 0 : index
    %c0_10 = arith.constant 0 : index
    %20 = vector.load %arg4[%c0_9, %c0_10] : memref<16x128xbf16, #tpu.memory_space<vmem>>, vector<16x128xbf16>
    tpu.vector_store %arg4[%c0_9, %c0_10], %19 {strides = array<i32>} : memref<16x128xbf16, #tpu.memory_space<vmem>>, vector<16x128xbf16>,
    return
  }
  func.func @transform_0(%arg0: i32) -> (i32, i32) {
    %c0_i32 = arith.constant 0 : i32
    %c0_i32_0 = arith.constant 0 : i32
    return %arg0, %c0_i32 : i32, i32
  }
  func.func @transform_1(%arg0: i32) -> (i32, i32) {
    %c0_i32 = arith.constant 0 : i32
    %c0_i32_0 = arith.constant 0 : i32
    %c0_i32_1 = arith.constant 0 : i32
    return %c0_i32, %c0_i32_0 : i32, i32
  }
  func.func @transform_2(%arg0: i32) -> (i32, i32) {
    %c0_i32 = arith.constant 0 : i32
    %c0_i32_0 = arith.constant 0 : i32
    %c0_i32_1 = arith.constant 0 : i32
    return %c0_i32, %c0_i32_0 : i32, i32
  }
  func.func @transform_3(%arg0: i32) -> (i32, i32) {
    %c0_i32 = arith.constant 0 : i32
    %c0_i32_0 = arith.constant 0 : i32
    return %arg0, %c0_i32 : i32, i32
  }
}

</mosaic_0001>

<llo_original>
// kernel: tpu_custom_call.1
$region0: #{tpu_custom_call.1}
  #allocation0 [shape = 'u32[]', space=smem, size = 0x4, offset = 0x4, fixed_abs, tag = 'smem constant byte address 0x4 - core index']
  #allocation1 [shape = 'u32[144,128]{1,0:T(1,128)}', space=vmem, size = 0x12000, scoped, tag = 'internal scratch']
  %s0 = inlined_call_operand.hbm [shape: bf16[32,128], index: 0, kind: input, shape index: {}]
  %s1 = inlined_call_operand.hbm [shape: bf16[128,128], index: 1, kind: input, shape index: {}]
  %s2 = inlined_call_operand.vmem [shape: f32[1,128], index: 2, kind: input, shape index: {}]
  %s3 = inlined_call_operand.hbm [shape: bf16[32,128], index: 3, kind: output, shape index: {}]
  %s4 = sld [smem:[#allocation0]]
  $region53: #{tpu_custom_call.1} parent=0
    _
  %s6 = ssub.s32 1, %s4
  %s7 = scalar_select 0, %s6, %s4
  $region1: #{tpu_custom_call.1} parent=0
    #allocation2 [shape = 'u8[8192]{0}', space=vmem, size = 0x2000, scoped, tag = 'input window, operand 0']
    #allocation3 [shape = 's32[2]{0}', space=sflag, size = 0x8, scoped, tag = 'scoped memory for tpu_custom_call.1']
    #allocation4 [shape = 's32[2]{0}', space=sflag, size = 0x8, scoped, tag = 'scoped memory for tpu_custom_call.1']
    #allocation5 [shape = 'u8[32768]{0}', space=vmem, size = 0x8000, scoped, tag = 'input window, operand 1, single buffered']
    #allocation6 [shape = 's32[1]{0}', space=sflag, size = 0x4, scoped, tag = 'scoped memory for tpu_custom_call.1']
    #allocation7 [shape = 'u8[8192]{0}', space=vmem, size = 0x2000, scoped, tag = 'output window, operand 0']
    %8 = vsyncpa [#allocation3], 0
    %s9 = scalar_lea.sflag [#allocation3], 1
    %10 = vsyncpa %s9, 0
    %11 = vsyncpa [#allocation6], 0
    %12 = vsyncpa [#allocation4], 0
    %s13 = scalar_lea.sflag [#allocation4], 1
    %14 = vsyncpa %s13, 0
    loop: start=0, step=1, limit=4
    $region2: #{tpu_custom_call.1} parent=1 // loop_pre_header
      _
    $region3: #{tpu_custom_call.1} parent=1 // loop_header
      %s16 = sphi 0, %s20
      %p17 = scmp.ge.s32.totalorder %s16, 4
      %s26 = sphi 0, %s28
      %s29 = sphi 0, %s26
      %s30 = sphi 0, %s29
      %s46 = sphi 0, %s30
      %s50 = sphi 0, %s50
      %s52 = sphi 0, %s50
      %s53 = sphi 0, %s52
      %s67 = sphi 0, %s53
      %s71 = sphi 0, %s71
      %s73 = sphi 0, %s71
      %s74 = sphi 0, %s73
      %s88 = sphi 0, %s74
      %s94 = sphi 0, %s96
      %s97 = sphi 0, %s94
      %s98 = sphi 0, %s97
      %s114 = sphi 0, %s98
    $region4: #{tpu_custom_call.1} parent=1 // loop_header_branch
      %19 = sbr.rel (%p17) target = $region8
    $region5: #{tpu_custom_call.1} parent=1 // loop_body
      %s21 = ssub.s32 %s16, 1
      %s22 = ssub.s32 %s16, 2
      %s23 = sadd.s32 %s16, 1
      %s24 = ssub.s32 %s16, %s23
      %p25 = scmp.eq.s32.totalorder %s24, 0
      %s27 = sadd.s32 %s26, 1
      %s28 = scalar_select %p25, %s26, %s27
      %p31 = pneg %p25
      %p32 = scmp.eq.s32.totalorder %s16, 1
      %p33 = por %p31, %p32
      %p34 = scmp.ne.s32.totalorder %s26, %s29
      %p35 = scmp.eq.s32.totalorder %s16, 0
      %p36 = por %p34, %p35
      %p37 = scmp.ne.s32.totalorder %s26, %s29
      %p38 = scmp.eq.s32.totalorder %s21, 1
      %p39 = por %p37, %p38
      %p40 = scmp.ne.s32.totalorder %s29, %s30
      %p41 = scmp.eq.s32.totalorder %s21, 0
      %p42 = por %p40, %p41
      %p43 = scmp.ne.s32.totalorder %s29, %s30
      %p44 = scmp.eq.s32.totalorder %s22, 1
      %p45 = por %p43, %p44
      %p47 = scmp.ne.s32.totalorder %s30, %s46
      %p48 = scmp.eq.s32.totalorder %s22, 0
      %p49 = por %p47, %p48
      %s51 = sadd.s32 %s50, 1
      %p54 = scmp.eq.s32.totalorder %s16, 1
      %p55 = scmp.ne.s32.totalorder %s50, %s52
      %p56 = scmp.eq.s32.totalorder %s16, 0
      %p57 = por %p55, %p56
      %p58 = scmp.ne.s32.totalorder %s50, %s52
      %p59 = scmp.eq.s32.totalorder %s21, 1
      %p60 = por %p58, %p59
      %p61 = scmp.ne.s32.totalorder %s52, %s53
      %p62 = scmp.eq.s32.totalorder %s21, 0
      %p63 = por %p61, %p62
      %p64 = scmp.ne.s32.totalorder %s52, %s53
      %p65 = scmp.eq.s32.totalorder %s22, 1
      %p66 = por %p64, %p65
      %p68 = scmp.ne.s32.totalorder %s53, %s67
      %p69 = scmp.eq.s32.totalorder %s22, 0
      %p70 = por %p68, %p69
      %s72 = sadd.s32 %s71, 1
      %p75 = scmp.eq.s32.totalorder %s16, 1
      %p76 = scmp.ne.s32.totalorder %s71, %s73
      %p77 = scmp.eq.s32.totalorder %s16, 0
      %p78 = por %p76, %p77
      %p79 = scmp.ne.s32.totalorder %s71, %s73
      %p80 = scmp.eq.s32.totalorder %s21, 1
      %p81 = por %p79, %p80
      %p82 = scmp.ne.s32.totalorder %s73, %s74
      %p83 = scmp.eq.s32.totalorder %s21, 0
      %p84 = por %p82, %p83
      %p85 = scmp.ne.s32.totalorder %s73, %s74
      %p86 = scmp.eq.s32.totalorder %s22, 1
      %p87 = por %p85, %p86
      %p89 = scmp.ne.s32.totalorder %s74, %s88
      %p90 = scmp.eq.s32.totalorder %s22, 0
      %p91 = por %p89, %p90
      %s92 = ssub.s32 %s16, %s23
      %p93 = scmp.eq.s32.totalorder %s92, 0
      %s95 = sadd.s32 %s94, 1
      %s96 = scalar_select %p93, %s94, %s95
      %p99 = pneg %p93
      %p100 = scmp.eq.s32.totalorder %s16, 1
      %p101 = por %p99, %p100
      %p102 = scmp.ne.s32.totalorder %s94, %s97
      %p103 = scmp.eq.s32.totalorder %s16, 0
      %p104 = por %p102, %p103
      %p105 = scmp.ne.s32.totalorder %s94, %s97
      %p106 = scmp.eq.s32.totalorder %s21, 1
      %p107 = por %p105, %p106
      %p108 = scmp.ne.s32.totalorder %s97, %s98
      %p109 = scmp.eq.s32.totalorder %s21, 0
      %p110 = por %p108, %p109
      %p111 = scmp.ne.s32.totalorder %s97, %s98
      %p112 = scmp.eq.s32.totalorder %s22, 1
      %p113 = por %p111, %p112
      %p115 = scmp.ne.s32.totalorder %s98, %s114
      %p116 = scmp.eq.s32.totalorder %s22, 0
      %p117 = por %p115, %p116
      %p118 = scmp.le.s32.totalorder 1, %s16
      %p119 = scmp.lt.s32.totalorder %s16, 3
      %p120 = pnand %p118, %p119
      %p121 = pneg %p120
      // Predicated region
      $region9: #{tpu_custom_call.1} parent=5 // pred_check
        _
      $region10: #{tpu_custom_call.1} parent=5 // pred_check_branch
        %123 = sbr.rel (%p120) target = $region12
      $region11: #{tpu_custom_call.1} parent=5 // pred_region
        %s124 = ssub.s32 %s16, 1
        // Predicated region
        $region13: #{tpu_custom_call.1} parent=11 // pred_check
          %p125 = pneg %p63
        $region14: #{tpu_custom_call.1} parent=11 // pred_check_branch
          %127 = sbr.rel (%p125) target = $region16
        $region15: #{tpu_custom_call.1} parent=11 // pred_region
          %s129 = ssub.s32 1024, 1024
          %130 = vsyncadd [#allocation6], %s129
          %s131 = sshll.u32 [#allocation5], 4
          %s132 = int_to_ptr.vmem [resolvable:$true] %s131
          %137 = dma.hbm_to_vmem [thread:$0]  %s1, 1024, %s132, [#allocation6], 64, 64, 4
        $region16: #{tpu_custom_call.1} parent=11 // pred_fallthru
          _
        // Predicated region
        $region17: #{tpu_custom_call.1} parent=11 // pred_check
          %p138 = pneg %p84
        $region18: #{tpu_custom_call.1} parent=11 // pred_check_branch
          %140 = sbr.rel (%p138) target = $region20
        $region19: #{tpu_custom_call.1} parent=11 // pred_region
          _
        $region20: #{tpu_custom_call.1} parent=11 // pred_fallthru
          _
      $region12: #{tpu_custom_call.1} parent=5 // pred_fallthru
        _
      %p141 = scmp.lt.s32.totalorder %s16, 2
      // Predicated region
      $region21: #{tpu_custom_call.1} parent=5 // pred_check
        %p142 = pneg %p141
      $region22: #{tpu_custom_call.1} parent=5 // pred_check_branch
        %144 = sbr.rel (%p142) target = $region24
      $region23: #{tpu_custom_call.1} parent=5 // pred_region
        // Predicated region
        $region25: #{tpu_custom_call.1} parent=23 // pred_check
          %p145 = pneg %p36
        $region26: #{tpu_custom_call.1} parent=23 // pred_check_branch
          %147 = sbr.rel (%p145) target = $region28
        $region27: #{tpu_custom_call.1} parent=23 // pred_region
          %s148 = sand.u32 %s26, 1
          %s149 = scalar_lea.sflag [#allocation3], %s148
          %s150 = sand.u32 %s26, 1
          %s151 = smul.addr %s150, 8
          %s152 = scalar_lea.vmem [#allocation2], %s151
          %s153 = smul.u32 2, %s16
          %s155 = ssub.s32 128, 128
          %156 = vsyncadd %s149, %s155
          %s157 = smul.addr %s153, 64
          %s158 = scalar_lea.hbm %s0, %s157
          %s159 = sshll.u32 %s152, 4
          %s160 = int_to_ptr.vmem [resolvable:$true] %s159
          %165 = dma.hbm_to_vmem [thread:$0]  %s158, 128, %s160, %s149, 64, 64, 4
        $region28: #{tpu_custom_call.1} parent=23 // pred_fallthru
          _
      $region24: #{tpu_custom_call.1} parent=5 // pred_fallthru
        _
      %p166 = scmp.le.s32.totalorder 1, %s16
      %p167 = scmp.lt.s32.totalorder %s16, 3
      %p168 = pnand %p166, %p167
      %p169 = pneg %p168
      // Predicated region
      $region29: #{tpu_custom_call.1} parent=5 // pred_check
        _
      $region30: #{tpu_custom_call.1} parent=5 // pred_check_branch
        %171 = sbr.rel (%p168) target = $region32
      $region31: #{tpu_custom_call.1} parent=5 // pred_region
        %s172 = ssub.s32 %s16, 1
        %s173 = sand.u32 %s29, 1
        %s174 = scalar_lea.sflag [#allocation3], %s173
        %s175 = sand.u32 %s29, 1
        %s176 = smul.addr %s175, 8
        %s177 = scalar_lea.vmem [#allocation2], %s176
        // Predicated region
        $region33: #{tpu_custom_call.1} parent=31 // pred_check
          %p178 = pneg %p42
        $region34: #{tpu_custom_call.1} parent=31 // pred_check_branch
          %180 = sbr.rel (%p178) target = $region36
        $region35: #{tpu_custom_call.1} parent=31 // pred_region
          %181 = dma.done %s174, 128
        $region36: #{tpu_custom_call.1} parent=31 // pred_fallthru
          _
        // Predicated region
        $region37: #{tpu_custom_call.1} parent=31 // pred_check
          %p182 = pneg %p63
        $region38: #{tpu_custom_call.1} parent=31 // pred_check_branch
          %184 = sbr.rel (%p182) target = $region40
        $region39: #{tpu_custom_call.1} parent=31 // pred_region
          %185 = dma.done [#allocation6], 1024
        $region40: #{tpu_custom_call.1} parent=31 // pred_fallthru
          _
        %s186 = sand.u32 %s29, 1
        %s187 = scalar_lea.sflag [#allocation3], %s186
        %s188 = sand.u32 %s29, 1
        %s189 = smul.addr %s188, 8
        %s190 = scalar_lea.vmem [#allocation2], %s189
        %p191 = pneg %p42
        %p192 = pneg %p39
        %p193 = pneg %p63
        %p194 = pneg %p60
        %p195 = pneg %p84
        %p196 = pneg %p81
        %p197 = pneg %p110
        %p198 = pneg %p107
        %s199 = sand.u32 %s97, 1
        %s200 = scalar_lea.sflag [#allocation4], %s199
        %s201 = sand.u32 %s97, 1
        %s202 = smul.addr %s201, 8
        %s203 = scalar_lea.vmem [#allocation7], %s202
        %s204 = smul.u32 2, %s21
        %s205 = smul.u32 2, %s21
        %v207 = vld [vmem:[%s177] sm:$0xf]
        %v208 = vld [vmem:[%s177 + $0x4] sm:$0xf]
        %v209 = vld [vmem:[#allocation5] sm:$0xf]
        %v210 = vld [vmem:[#allocation5 + $0x4] sm:$0xf]
        %v211 = vld [vmem:[#allocation5 + $0x8] sm:$0xf]
        %v212 = vld [vmem:[#allocation5 + $0xc] sm:$0xf]
        %v213 = vld [vmem:[#allocation5 + $0x10] sm:$0xf]
        %v214 = vld [vmem:[#allocation5 + $0x14] sm:$0xf]
        %v215 = vld [vmem:[#allocation5 + $0x18] sm:$0xf]
        %v216 = vld [vmem:[#allocation5 + $0x1c] sm:$0xf]
        %v217 = vld [vmem:[#allocation5 + $0x20] sm:$0xf]
        %v218 = vld [vmem:[#allocation5 + $0x24] sm:$0xf]
        %v219 = vld [vmem:[#allocation5 + $0x28] sm:$0xf]
        %v220 = vld [vmem:[#allocation5 + $0x2c] sm:$0xf]
        %v221 = vld [vmem:[#allocation5 + $0x30] sm:$0xf]
        %v222 = vld [vmem:[#allocation5 + $0x34] sm:$0xf]
        %v223 = vld [vmem:[#allocation5 + $0x38] sm:$0xf]
        %v224 = vld [vmem:[#allocation5 + $0x3c] sm:$0xf]
        %v225 = vld [vmem:[%s2] sm:$0x1]
        %v227 = vlaneseq
        %v228 = vshrl.u32 %v227, 7
        %v229 = vsub.s32 0, %v228
        %v230 = vrot.slane %v225, %v229
        %v234 = vunpack.c.l.b16 %v207
        %v235 = vunpack.c.l.b16 %v208
        %v236 = vpack.c.b16 %v235, %v234
        %v254 = vunpack.c.l.b16 %v209
        %v255 = vunpack.c.l.b16 %v210
        %v256 = vunpack.c.l.b16 %v211
        %v257 = vunpack.c.l.b16 %v212
        %v258 = vunpack.c.l.b16 %v213
        %v259 = vunpack.c.l.b16 %v214
        %v260 = vunpack.c.l.b16 %v215
        %v261 = vunpack.c.l.b16 %v216
        %v262 = vunpack.c.l.b16 %v217
        %v263 = vunpack.c.l.b16 %v218
        %v264 = vunpack.c.l.b16 %v219
        %v265 = vunpack.c.l.b16 %v220
        %v266 = vunpack.c.l.b16 %v221
        %v267 = vunpack.c.l.b16 %v222
        %v268 = vunpack.c.l.b16 %v223
        %v269 = vunpack.c.l.b16 %v224
        %v270 = vpack.c.b16 %v255, %v254
        %v271 = vpack.c.b16 %v257, %v256
        %v272 = vpack.c.b16 %v259, %v258
        %v273 = vpack.c.b16 %v261, %v260
        %v274 = vpack.c.b16 %v263, %v262
        %v275 = vpack.c.b16 %v265, %v264
        %v276 = vpack.c.b16 %v267, %v266
        %v277 = vpack.c.b16 %v269, %v268
        %286 = vmatprep.subr.bf16.mxu0 0
        %287 = vmatpush1.bf16.msra.mxu0 %v277
        %288 = vmatprep.subr.bf16.mxu0 0
        %289 = vmatpush1.bf16.msra.mxu0 %v276
        %290 = vmatprep.subr.bf16.mxu0 0
        %291 = vmatpush1.bf16.msra.mxu0 %v275
        %292 = vmatprep.subr.bf16.mxu0 0
        %293 = vmatpush1.bf16.msra.mxu0 %v274
        %294 = vmatprep.subr.bf16.mxu0 0
        %295 = vmatpush1.bf16.msra.mxu0 %v273
        %296 = vmatprep.subr.bf16.mxu0 0
        %297 = vmatpush1.bf16.msra.mxu0 %v272
        %298 = vmatprep.subr.bf16.mxu0 0
        %299 = vmatpush1.bf16.msra.mxu0 %v271
        %300 = vmatprep.subr.bf16.mxu0 0
        %301 = vmatpush1.bf16.msra.mxu0 %v270
        %302 = vmatprep.subr.bf16.mxu0 0
        %303 = vmatpush2.bf16.msra.mxu0 0
        %304 = vmatprep.subr.bf16.mxu0 0
        %305 = vmatpush2.bf16.msra.mxu0 0
        %306 = vmatprep.subr.bf16.mxu0 0
        %307 = vmatpush2.bf16.msra.mxu0 0
        %308 = vmatprep.subr.bf16.mxu0 0
        %309 = vmatpush2.bf16.msra.mxu0 0
        %310 = vmatprep.subr.bf16.mxu0 0
        %311 = vmatpush2.bf16.msra.mxu0 0
        %312 = vmatprep.subr.bf16.mxu0 0
        %313 = vmatpush2.bf16.msra.mxu0 0
        %314 = vmatprep.subr.bf16.mxu0 0
        %315 = vmatpush2.bf16.msra.mxu0 0
        %316 = vmatprep.subr.bf16.mxu0 0
        %317 = vmatpush2.bf16.msra.mxu0 0
        %318 = vmatprep.mubr.bf16.mxu0 0
        %319 = vmatmul.mubr.bf16.gmra.mxu0 %v236
        %v320 = vpop.f32.mrf.mxu0
        %v321 = vadd.f32 %v230, %v320
        %v322 = vpop.f32.mrf.mxu0
        %v323 = vpop.f32.mrf.mxu0
        %v324 = vadd.f32 %v230, %v323
        %v325 = vpop.f32.mrf.mxu0
        %326 = vdwg.mxu0
        %v327 = vmul.f32 %v321, 0.5
        %v328 = vmul.f32 %v324, 0.5
        %v329 = vmul.f32 %v321, %v321
        %v330 = vmul.f32 %v324, %v324
        %v331 = vmul.f32 %v329, %v321
        %v332 = vmul.f32 %v330, %v324
        %v333 = vmul.f32 %v331, 0.044715
        %v334 = vmul.f32 %v332, 0.044715
        %v335 = vadd.f32 %v321, %v333
        %v336 = vadd.f32 %v324, %v334
        %v337 = vmul.f32 %v335, 0.7978846
        %v338 = vmul.f32 %v336, 0.7978846
        %v339 = vtanh.pop %v337
        %v340 = vtanh.pop %v338
        %v341 = vadd.f32 %v339, 1.0
        %v342 = vadd.f32 %v340, 1.0
        %v343 = vmul.f32 %v327, %v341
        %v344 = vmul.f32 %v328, %v342
        %v345 = vpack.c.bf16 %v344, %v343
        %v347 = vunpack.c.l.b16 %v345
        %v348 = vunpack.c.h.b16 %v345
        %v349 = vpack.c.b16 %v347, %v347
        %v350 = vpack.c.b16 %v348, %v348
        %353 = vst [vmem:[%s203] sm:$0xf] %v349
        %354 = vst [vmem:[%s203 + $0x4] sm:$0xf] %v350
        %s355 = sand.u32 %s97, 1
        %s356 = scalar_lea.sflag [#allocation4], %s355
        %s357 = sand.u32 %s97, 1
        %s358 = smul.addr %s357, 8
        %s359 = scalar_lea.vmem [#allocation7], %s358
        // Predicated region
        $region41: #{tpu_custom_call.1} parent=31 // pred_check
          %p360 = pneg %p107
        $region42: #{tpu_custom_call.1} parent=31 // pred_check_branch
          %362 = sbr.rel (%p360) target = $region44
        $region43: #{tpu_custom_call.1} parent=31 // pred_region
          %s363 = smul.u32 2, %s21
          %s365 = ssub.s32 128, 128
          %366 = vsyncadd %s356, %s365
          %s367 = smul.addr %s363, 64
          %s368 = scalar_lea.hbm %s3, %s367
          %s369 = sshll.u32 %s359, 4
          %s370 = int_to_ptr.vmem [resolvable:$true] %s369
          %375 = dma.vmem_to_hbm [thread:$0]  %s370, 128, %s368, %s356, 64, 64, 4
        $region44: #{tpu_custom_call.1} parent=31 // pred_fallthru
          _
      $region32: #{tpu_custom_call.1} parent=5 // pred_fallthru
        _
      %p376 = scmp.le.s32.totalorder 2, %s16
      // Predicated region
      $region45: #{tpu_custom_call.1} parent=5 // pred_check
        %p377 = pneg %p376
      $region46: #{tpu_custom_call.1} parent=5 // pred_check_branch
        %379 = sbr.rel (%p377) target = $region48
      $region47: #{tpu_custom_call.1} parent=5 // pred_region
        %s380 = ssub.s32 %s16, 2
        // Predicated region
        $region49: #{tpu_custom_call.1} parent=47 // pred_check
          %p381 = pneg %p113
        $region50: #{tpu_custom_call.1} parent=47 // pred_check_branch
          %383 = sbr.rel (%p381) target = $region52
        $region51: #{tpu_custom_call.1} parent=47 // pred_region
          %s384 = sand.u32 %s98, 1
          %s385 = scalar_lea.sflag [#allocation4], %s384
          %s386 = sand.u32 %s98, 1
          %s387 = smul.addr %s386, 8
          %s388 = scalar_lea.vmem [#allocation7], %s387
          %389 = dma.done %s385, 128
        $region52: #{tpu_custom_call.1} parent=47 // pred_fallthru
          _
      $region48: #{tpu_custom_call.1} parent=5 // pred_fallthru
        _
    $region6: #{tpu_custom_call.1} parent=1 // loop_footer
      %s20 = sadd.s32 1, %s16
    $region7: #{tpu_custom_call.1} parent=1 // loop_footer_branch
      %15 = sbr.rel target = $region3
    $region8: #{tpu_custom_call.1} parent=1 // loop_exit
      _
    %390 = vsyncpa [#allocation3], 1
    %s391 = scalar_lea.sflag [#allocation3], 1
    %392 = vsyncpa %s391, 1
    %393 = vsyncpa [#allocation6], 1
    %394 = vsyncpa [#allocation4], 1
    %s395 = scalar_lea.sflag [#allocation4], 1
    %396 = vsyncpa %s395, 1

</llo_original>
